<compile_context>
chip_gen: v7x
topology: tpu7x:2x2x1
jax: 0.10.0
libtpu: 0.0.40
codegen_flags: <defaults>
</compile_context>

<pallas_src>
import jax
import jax.numpy as jnp
from jax import lax
from jax.experimental import pallas as pl
from jax.experimental.pallas import tpu as pltpu


def _round_up(x: int, m: int) -> int:
    return ((x + m - 1) // m) * m


def _sublane(dtype) -> int:
    # Native sublane pack of a vreg: f32 -> 8, bf16 -> 16, int8/fp8 -> 32.
    return max(8, 32 // jnp.dtype(dtype).itemsize)


# Budget for the pipelined tile buffers (hidden x2, weight x3, output x2) and
# the scoped-VMEM limit handed to Mosaic.  48 MiB stays under v7x's 64 MiB
# physical VMEM per TensorCore with headroom, and well under v5e/v6e's 128 MiB.
_TILE_VMEM_BUDGET = 40 * 1024 * 1024
_VMEM_LIMIT_BYTES = 48 * 1024 * 1024


def _tile_vmem_bytes(tm, tn, K, h_item, w_item, o_item, w_bufs=3):
    return (2 * tm * K * h_item          # hidden, double-buffered
            + w_bufs * tn * K * w_item   # weight, up to triple-buffered
            + 2 * tm * tn * o_item)      # output, double-buffered


def _lm_head_kernel(h_ref, w_ref, o_ref):
    """One (tm, tn) logits tile.

    h_ref: (tm, K)  hidden tile
    w_ref: (tn, K)  tied-embedding tile (vocab-major, NOT pre-transposed)
    o_ref: (tm, tn) logits tile
    """
    # Contract the shared last (K) dim -> transposed-RHS feed into the MXU.
    # TODO(synk): verify in the Mosaic bundle dump that this lowers without a
    # per-inner-step vxpose of the (tn, K) weight tile; if vxpose shows up,
    # hoist a once-per-vocab-tile transpose (pl.when(pl.program_id(1) == 0))
    # into a VMEM scratch since the weight tile is constant across the M axis.
    o_ref[...] = lax.dot_general(
        h_ref[...],
        w_ref[...],
        dimension_numbers=(((1,), (1,)), ((), ())),
        preferred_element_type=jnp.float32,
    ).astype(o_ref.dtype)


def pad_lm_head_weight(embed_weight: jax.Array, *, multiple: int = 2048,
                       dtype=None) -> jax.Array:
    """Init-time prep of the tied embedding: optional cast (e.g. to bf16 to
    halve streamed weight bytes) and pad the vocab dim to a tile multiple.

    Do this ONCE at model init so gpt2_lm_head never has to materialize a
    per-call HBM copy of the full weight."""
    if dtype is not None and embed_weight.dtype != jnp.dtype(dtype):
        embed_weight = embed_weight.astype(dtype)
    vocab = embed_weight.shape[0]
    pad = _round_up(vocab, multiple) - vocab
    if pad:
        embed_weight = jnp.pad(embed_weight, ((0, pad), (0, 0)))
    return embed_weight


def gpt2_lm_head(hidden_state: jax.Array, embed_weight: jax.Array, *,
                 vocab: int | None = None, tm: int = 256, tn: int = 2048,
                 out_dtype=None, return_padded_vocab: bool = False) -> jax.Array:
    """lm_logits = hidden_state @ embed_weight[:vocab].T

    hidden_state: (batch, seq, n_embd)
    embed_weight: (V, n_embd) tied embedding; V may already be pre-padded to a
                  tile multiple via pad_lm_head_weight (recommended).
    vocab:        true vocab size (defaults to V).
    out_dtype:    logits dtype (defaults to hidden dtype, matching nn.Linear;
                  pass jnp.float32 for bf16 activations if loss numerics matter).
    return_padded_vocab: return logits with the padded vocab dim (skips the
                  large output slice; pad columns are 0-weight rows -> logit 0,
                  mask them before softmax/loss).
    """
    batch, seq, n_embd = hidden_state.shape
    n_rows, n_embd_w = embed_weight.shape
    assert n_embd == n_embd_w, "hidden size mismatch with embedding weight"
    vocab = n_rows if vocab is None else vocab
    assert vocab <= n_rows
    out_dtype = hidden_state.dtype if out_dtype is None else jnp.dtype(out_dtype)

    M, K, N = batch * seq, n_embd, n_rows
    h_item = jnp.dtype(hidden_state.dtype).itemsize
    w_item = jnp.dtype(embed_weight.dtype).itemsize
    o_item = jnp.dtype(out_dtype).itemsize

    # ---- tile selection -----------------------------------------------------
    sub = _sublane(hidden_state.dtype)
    tm = max(sub, min(tm, _round_up(M, sub)))
    tn = min(tn, _round_up(N, 128))
    # Shrink tn until the pipelined buffers fit the VMEM tile budget
    # (relevant for K=1600 / f32 configs; bf16 fits at tn=2048 everywhere).
    while tn > 512 and _tile_vmem_bytes(tm, tn, K, h_item, w_item, o_item) > _TILE_VMEM_BUDGET:
        tn //= 2

    M_pad = _round_up(M, tm)
    N_pad = _round_up(N, tn)

    h2d = hidden_state.reshape(M, K)
    if M_pad != M:
        h2d = jnp.pad(h2d, ((0, M_pad - M), (0, 0)))   # hidden is small; cheap
    w = embed_weight
    if N_pad != N:
        # NOTE: this copies the full tied weight in HBM every call; avoid it by
        # pre-padding once at init with pad_lm_head_weight().
        w = jnp.pad(w, ((0, N_pad - N), (0, 0)))

    n_vtiles, n_mtiles = N_pad // tn, M_pad // tm
    # Grid: vocab tiles outer, M tiles inner -> the weight tile (indexed only by
    # j) is constant across the inner axis, so the tied weight is streamed from
    # HBM exactly once; only the (small) hidden is re-read (vocab/tn) times.
    grid = (n_vtiles, n_mtiles)

    if n_vtiles >= 3:
        # Extra lookahead so the next weight-tile DMA at each vocab-tile
        # boundary is hidden behind more than one inner step's compute.
        w_spec = pl.BlockSpec((tn, K), lambda j, i: (j, 0),
                              pipeline_mode=pl.Buffered(3))
    else:
        w_spec = pl.BlockSpec((tn, K), lambda j, i: (j, 0))

    cost = pl.CostEstimate(
        flops=2 * M_pad * N_pad * K,
        transcendentals=0,
        bytes_accessed=(N_pad * K * w_item                 # weight, streamed once
                        + n_vtiles * M_pad * K * h_item    # hidden re-stream
                        + M_pad * N_pad * o_item),         # logits written once
    )

    out = pl.pallas_call(
        _lm_head_kernel,
        out_shape=jax.ShapeDtypeStruct((M_pad, N_pad), out_dtype),
        grid_spec=pltpu.PrefetchScalarGridSpec(
            num_scalar_prefetch=0,
            grid=grid,
            in_specs=[
                pl.BlockSpec((tm, K), lambda j, i: (i, 0)),  # hidden
                w_spec,                                      # weight (vocab-major)
            ],
            out_specs=pl.BlockSpec((tm, tn), lambda j, i: (i, j)),
        ),
        compiler_params=pltpu.CompilerParams(
            # Outer (vocab) axis parallel: v7x megacore splits the weight stream
            # across TensorCores (aggregate weight bytes stay 1x). Inner M axis
            # left "arbitrary" so the compiler never shards M instead.
            dimension_semantics=("parallel", "arbitrary"),
            vmem_limit_bytes=_VMEM_LIMIT_BYTES,
        ),
        cost_estimate=cost,
    )(h2d, w)

    # Slice only the dims that were actually padded; callers that keep the
    # vocab padded end-to-end (return_padded_vocab=True) skip the big slice.
    n_out = N_pad if return_padded_vocab else vocab
    if M_pad != M:
        out = out[:M]
    if n_out != N_pad:
        out = out[:, :n_out]
    return out.reshape(batch, seq, n_out)


if __name__ == "__main__":
    # Small, deterministic synthetic setup consistent with the module:
    # hidden_state: (batch=2, seq=8, n_embd=32); tied embedding: (vocab=256, 32)
    batch, seq, n_embd, vocab = 2, 8, 32, 256

    key = jax.random.PRNGKey(0)
    k_h, k_w = jax.random.split(key)
    hidden_state = jax.random.normal(k_h, (batch, seq, n_embd), dtype=jnp.float32)
    embed_weight = (
        jax.random.normal(k_w, (vocab, n_embd), dtype=jnp.float32) * 0.02
    )

    # Init-time weight prep (no-op here since 256 is already lane-aligned).
    # For real GPT-2: pad_lm_head_weight(w, multiple=2048, dtype=jnp.bfloat16).
    w_prepped = pad_lm_head_weight(embed_weight, multiple=128)

    logits = gpt2_lm_head(hidden_state, w_prepped, vocab=vocab)
    jax.block_until_ready(logits)

    # Reference check against plain JAX (same semantics as nn.Linear(bias=False)).
    ref = jnp.einsum("bse,ve->bsv", hidden_state, embed_weight)
    assert logits.shape == (batch, seq, vocab)
    assert jnp.allclose(logits, ref, atol=1e-4, rtol=1e-4)

    print("KERNEL_OK")
</pallas_src>

<mosaic_0001>
module attributes {stable_mosaic.version = 11 : i64} {
  func.func @_lm_head_kernel(%arg0: i32, %arg1: i32, %arg2: memref<16x32xf32, #tpu.memory_space<vmem>>, %arg3: memref<256x32xf32, #tpu.memory_space<vmem>>, %arg4: memref<16x256xf32, #tpu.memory_space<vmem>>) attributes {dimension_semantics = [#tpu.dimension_semantics<parallel>, #tpu.dimension_semantics<arbitrary>], iteration_bounds = array<i64: 1, 1>, scalar_prefetch = 0 : i64, scratch_operands = 0 : i64, tpu.core_type = #tpu.core_type<tc>, window_params = [{transform_indices = @transform_0, window_bounds = array<i64: 16, 32>}, {transform_indices = @transform_1, window_bounds = array<i64: 256, 32>}, {transform_indices = @transform_2, window_bounds = array<i64: 16, 256>}]} {
    %c0 = arith.constant 0 : index
    %c0_0 = arith.constant 0 : index
    %0 = vector.load %arg2[%c0, %c0_0] : memref<16x32xf32, #tpu.memory_space<vmem>>, vector<16x32xf32>
    %c0_1 = arith.constant 0 : index
    %c0_2 = arith.constant 0 : index
    %1 = vector.load %arg3[%c0_1, %c0_2] : memref<256x32xf32, #tpu.memory_space<vmem>>, vector<256x32xf32>
    %cst = arith.constant dense<0.000000e+00> : vector<16x256xf32>
    %2 = tpu.matmul %0, %1, %cst {dimension_numbers = #tpu.dot_dimension_numbers<[1], [1], [0], [0], [0, 0, 1, 0], [], []>} : vector<16x32xf32>, vector<256x32xf32>, vector<16x256xf32> -> vector<16x256xf32>
    %c0_3 = arith.constant 0 : index
    %c0_4 = arith.constant 0 : index
    %3 = vector.load %arg4[%c0_3, %c0_4] : memref<16x256xf32, #tpu.memory_space<vmem>>, vector<16x256xf32>
    tpu.vector_store %arg4[%c0_3, %c0_4], %2 {strides = array<i32>} : memref<16x256xf32, #tpu.memory_space<vmem>>, vector<16x256xf32>,
    return
  }
  func.func @transform_0(%arg0: i32, %arg1: i32) -> (i32, i32) {
    %c0_i32 = arith.constant 0 : i32
    %c0_i32_0 = arith.constant 0 : i32
    return %arg1, %c0_i32 : i32, i32
  }
  func.func @transform_1(%arg0: i32, %arg1: i32) -> (i32, i32) {
    %c0_i32 = arith.constant 0 : i32
    %c0_i32_0 = arith.constant 0 : i32
    return %arg0, %c0_i32 : i32, i32
  }
  func.func @transform_2(%arg0: i32, %arg1: i32) -> (i32, i32) {
    %c0_i32 = arith.constant 0 : i32
    return %arg1, %arg0 : i32, i32
  }
}

</mosaic_0001>

<llo_original>
// kernel: tpu_custom_call.1
$region0: #{tpu_custom_call.1}
  #allocation0 [shape = 'u32[]', space=smem, size = 0x4, offset = 0x4, fixed_abs, tag = 'smem constant byte address 0x4 - core index']
  #allocation1 [shape = 'u32[144,128]{1,0:T(1,128)}', space=vmem, size = 0x12000, scoped, tag = 'internal scratch']
  %s0 = inlined_call_operand.vmem [shape: f32[16,32], index: 0, kind: input, shape index: {}]
  %s1 = inlined_call_operand.vmem [shape: f32[256,32], index: 1, kind: input, shape index: {}]
  %s2 = inlined_call_operand.hbm [shape: f32[16,256], index: 2, kind: output, shape index: {}]
  %s3 = sld [smem:[#allocation0]]
  $region18: #{tpu_custom_call.1} parent=0
    _
  %s5 = ssub.s32 1, %s3
  %s6 = scalar_select 0, %s5, %s3
  $region1: #{tpu_custom_call.1} parent=0
    #allocation2 [shape = 'u8[16384]{0}', space=vmem, size = 0x4000, scoped, tag = 'output window, operand 0, single buffered']
    #allocation3 [shape = 's32[1]{0}', space=sflag, size = 0x4, scoped, tag = 'scoped memory for tpu_custom_call.1']
    %7 = vsyncpa [#allocation3], 0
    // Predicated region
    $region2: #{tpu_custom_call.1} parent=1 // pred_check
      _
    $region3: #{tpu_custom_call.1} parent=1 // pred_check_branch
      %9 = sbr.rel (0) target = $region5
    $region4: #{tpu_custom_call.1} parent=1 // pred_region
      _
    $region5: #{tpu_custom_call.1} parent=1 // pred_fallthru
      _
    // Predicated region
    $region6: #{tpu_custom_call.1} parent=1 // pred_check
      _
    $region7: #{tpu_custom_call.1} parent=1 // pred_check_branch
      %11 = sbr.rel (0) target = $region9
    $region8: #{tpu_custom_call.1} parent=1 // pred_region
      _
    $region9: #{tpu_custom_call.1} parent=1 // pred_fallthru
      _
    %v12 = vld [vmem:[%s0] sm:$0xff]
    %v13 = vld [vmem:[%s0 + $0x8] sm:$0xff]
    %v14 = vld [vmem:[%s1] sm:$0xff]
    %v15 = vld [vmem:[%s1 + $0x8] sm:$0xff]
    %v16 = vld [vmem:[%s1 + $0x10] sm:$0xff]
    %v17 = vld [vmem:[%s1 + $0x18] sm:$0xff]
    %v18 = vld [vmem:[%s1 + $0x20] sm:$0xff]
    %v19 = vld [vmem:[%s1 + $0x28] sm:$0xff]
    %v20 = vld [vmem:[%s1 + $0x30] sm:$0xff]
    %v21 = vld [vmem:[%s1 + $0x38] sm:$0xff]
    %v22 = vld [vmem:[%s1 + $0x40] sm:$0xff]
    %v23 = vld [vmem:[%s1 + $0x48] sm:$0xff]
    %v24 = vld [vmem:[%s1 + $0x50] sm:$0xff]
    %v25 = vld [vmem:[%s1 + $0x58] sm:$0xff]
    %v26 = vld [vmem:[%s1 + $0x60] sm:$0xff]
    %v27 = vld [vmem:[%s1 + $0x68] sm:$0xff]
    %v28 = vld [vmem:[%s1 + $0x70] sm:$0xff]
    %v29 = vld [vmem:[%s1 + $0x78] sm:$0xff]
    %v30 = vld [vmem:[%s1 + $0x80] sm:$0xff]
    %v31 = vld [vmem:[%s1 + $0x88] sm:$0xff]
    %v32 = vld [vmem:[%s1 + $0x90] sm:$0xff]
    %v33 = vld [vmem:[%s1 + $0x98] sm:$0xff]
    %v34 = vld [vmem:[%s1 + $0xa0] sm:$0xff]
    %v35 = vld [vmem:[%s1 + $0xa8] sm:$0xff]
    %v36 = vld [vmem:[%s1 + $0xb0] sm:$0xff]
    %v37 = vld [vmem:[%s1 + $0xb8] sm:$0xff]
    %v38 = vld [vmem:[%s1 + $0xc0] sm:$0xff]
    %v39 = vld [vmem:[%s1 + $0xc8] sm:$0xff]
    %v40 = vld [vmem:[%s1 + $0xd0] sm:$0xff]
    %v41 = vld [vmem:[%s1 + $0xd8] sm:$0xff]
    %v42 = vld [vmem:[%s1 + $0xe0] sm:$0xff]
    %v43 = vld [vmem:[%s1 + $0xe8] sm:$0xff]
    %v44 = vld [vmem:[%s1 + $0xf0] sm:$0xff]
    %v45 = vld [vmem:[%s1 + $0xf8] sm:$0xff]
    %vm46 = vcmask 261120
    %v48 = vsel %vm46, %v12, 0
    %v51 = vsel %vm46, %v13, 0
    %v54 = vsel %vm46, %v14, 0
    %v57 = vsel %vm46, %v15, 0
    %v60 = vsel %vm46, %v16, 0
    %v63 = vsel %vm46, %v17, 0
    %v66 = vsel %vm46, %v18, 0
    %v69 = vsel %vm46, %v19, 0
    %v72 = vsel %vm46, %v20, 0
    %v75 = vsel %vm46, %v21, 0
    %v78 = vsel %vm46, %v22, 0
    %v81 = vsel %vm46, %v23, 0
    %v84 = vsel %vm46, %v24, 0
    %v87 = vsel %vm46, %v25, 0
    %v90 = vsel %vm46, %v26, 0
    %v93 = vsel %vm46, %v27, 0
    %v96 = vsel %vm46, %v28, 0
    %v99 = vsel %vm46, %v29, 0
    %v102 = vsel %vm46, %v30, 0
    %v105 = vsel %vm46, %v31, 0
    %v108 = vsel %vm46, %v32, 0
    %v111 = vsel %vm46, %v33, 0
    %v114 = vsel %vm46, %v34, 0
    %v117 = vsel %vm46, %v35, 0
    %v120 = vsel %vm46, %v36, 0
    %v123 = vsel %vm46, %v37, 0
    %v126 = vsel %vm46, %v38, 0
    %v129 = vsel %vm46, %v39, 0
    %v132 = vsel %vm46, %v40, 0
    %v135 = vsel %vm46, %v41, 0
    %v138 = vsel %vm46, %v42, 0
    %v141 = vsel %vm46, %v43, 0
    %v144 = vsel %vm46, %v44, 0
    %v147 = vsel %vm46, %v45, 0
    %149 = vmatprep.subr.mxu0 0.0
    %150 = vmatpush1.xpose.msra.mxu0 %v54
    %151 = vmatprep.subr.mxu0 0.0
    %152 = vmatpush1.xpose.msra.mxu0 %v57
    %153 = vmatprep.subr.mxu0 0.0
    %154 = vmatpush1.xpose.msra.mxu0 %v60
    %155 = vmatprep.subr.mxu0 0.0
    %156 = vmatpush1.xpose.msra.mxu0 %v63
    %157 = vmatprep.subr.mxu0 0.0
    %158 = vmatpush1.xpose.msra.mxu0 %v66
    %159 = vmatprep.subr.mxu0 0.0
    %160 = vmatpush1.xpose.msra.mxu0 %v69
    %161 = vmatprep.subr.mxu0 0.0
    %162 = vmatpush1.xpose.msra.mxu0 %v72
    %163 = vmatprep.subr.mxu0 0.0
    %164 = vmatpush1.xpose.msra.mxu0 %v75
    %165 = vmatprep.subr.mxu0 0.0
    %166 = vmatpush1.xpose.msra.mxu0 %v78
    %167 = vmatprep.subr.mxu0 0.0
    %168 = vmatpush1.xpose.msra.mxu0 %v81
    %169 = vmatprep.subr.mxu0 0.0
    %170 = vmatpush1.xpose.msra.mxu0 %v84
    %171 = vmatprep.subr.mxu0 0.0
    %172 = vmatpush1.xpose.msra.mxu0 %v87
    %173 = vmatprep.subr.mxu0 0.0
    %174 = vmatpush1.xpose.msra.mxu0 %v90
    %175 = vmatprep.subr.mxu0 0.0
    %176 = vmatpush1.xpose.msra.mxu0 %v93
    %177 = vmatprep.subr.mxu0 0.0
    %178 = vmatpush1.xpose.msra.mxu0 %v96
    %179 = vmatprep.subr.mxu0 0.0
    %180 = vmatpush1.xpose.msra.mxu0 %v99
    %181 = vmatprep.subr.mxu0 0.0
    %182 = vmatpush1.xpose.msra.mxu0 %v102
    %183 = vmatprep.subr.mxu0 0.0
    %184 = vmatpush1.xpose.msra.mxu0 %v105
    %185 = vmatprep.subr.mxu0 0.0
    %186 = vmatpush1.xpose.msra.mxu0 %v108
    %187 = vmatprep.subr.mxu0 0.0
    %188 = vmatpush1.xpose.msra.mxu0 %v111
    %189 = vmatprep.subr.mxu0 0.0
    %190 = vmatpush1.xpose.msra.mxu0 %v114
    %191 = vmatprep.subr.mxu0 0.0
    %192 = vmatpush1.xpose.msra.mxu0 %v117
    %193 = vmatprep.subr.mxu0 0.0
    %194 = vmatpush1.xpose.msra.mxu0 %v120
    %195 = vmatprep.subr.mxu0 0.0
    %196 = vmatpush1.xpose.msra.mxu0 %v123
    %197 = vmatprep.subr.mxu0 0.0
    %198 = vmatpush1.xpose.msra.mxu0 %v126
    %199 = vmatprep.subr.mxu0 0.0
    %200 = vmatpush1.xpose.msra.mxu0 %v129
    %201 = vmatprep.subr.mxu0 0.0
    %202 = vmatpush1.xpose.msra.mxu0 %v132
    %203 = vmatprep.subr.mxu0 0.0
    %204 = vmatpush1.xpose.msra.mxu0 %v135
    %205 = vmatprep.subr.mxu0 0.0
    %206 = vmatpush1.xpose.msra.mxu0 %v138
    %207 = vmatprep.subr.mxu0 0.0
    %208 = vmatpush1.xpose.msra.mxu0 %v141
    %209 = vmatprep.subr.mxu0 0.0
    %210 = vmatpush1.xpose.msra.mxu0 %v144
    %211 = vmatprep.subr.mxu0 0.0
    %212 = vmatpush1.xpose.msra.mxu0 %v147
    %213 = vmatprep.mubr.f32.mxu0 0.0
    %214 = vmatmul.mubr.f32.gmra.mrb[0].mxu0 %v48
    %v215 = vpop.f32.mrb[0].mxu0
    %v216 = vadd.f32 0.0, %v215
    %v217 = vpop.f32.mrb[0].mxu0
    %v218 = vadd.f32 0.0, %v217
    %219 = vmatprep.mubr.f32.mxu0 0.0
    %220 = vmatmul.mubr.f32.gmra.mrb[0].mxu0 %v51
    %v221 = vpop.f32.mrb[0].mxu0
    %v222 = vadd.f32 0.0, %v221
    %v223 = vpop.f32.mrb[0].mxu0
    %v224 = vadd.f32 0.0, %v223
    %225 = vdwg.mxu0
    %226 = vst [vmem:[#allocation2] sm:$0xff] %v216
    %227 = vst [vmem:[#allocation2 + $0x8] sm:$0xff] %v218
    %228 = vst [vmem:[#allocation2 + $0x10] sm:$0xff] %v222
    %229 = vst [vmem:[#allocation2 + $0x18] sm:$0xff] %v224
    // Predicated region
    $region10: #{tpu_custom_call.1} parent=1 // pred_check
      _
    $region11: #{tpu_custom_call.1} parent=1 // pred_check_branch
      %231 = sbr.rel (0) target = $region13
    $region12: #{tpu_custom_call.1} parent=1 // pred_region
      %s233 = ssub.s32 512, 512
      %234 = vsyncadd [#allocation3], %s233
      %s235 = sshll.u32 [#allocation2], 4
      %s236 = int_to_ptr.vmem [resolvable:$true] %s235
      %241 = dma.vmem_to_hbm [thread:$0]  %s236, 512, %s2, [#allocation3], 256, 256, 16
    $region13: #{tpu_custom_call.1} parent=1 // pred_fallthru
      _
    // Predicated region
    $region14: #{tpu_custom_call.1} parent=1 // pred_check
      _
    $region15: #{tpu_custom_call.1} parent=1 // pred_check_branch
      %243 = sbr.rel (0) target = $region17
    $region16: #{tpu_custom_call.1} parent=1 // pred_region
      %244 = dma.done [#allocation3], 512
    $region17: #{tpu_custom_call.1} parent=1 // pred_fallthru
      _
    %245 = vsyncpa [#allocation3], 1

</llo_original>
